<compile_context>
chip_gen: v7x
topology: tpu7x:2x2x1
jax: 0.10.0
libtpu: 0.0.40
codegen_flags: <defaults>
</compile_context>

<pallas_src>
import functools

import jax
import jax.numpy as jnp
from jax import lax
from jax.experimental import pallas as pl
from jax.experimental.pallas import tpu as pltpu

LANE = 128  # pad the action axis to one full lane register


def mlp_argmax_kernel(x_ref, w1_ref, b1_ref, w2_ref, b2_ref,
                      q_ref, act_ref, *, n_actions, compute_dtype):
    # ---- Linear1 -> tanh -> Linear2 (MXU matmuls, f32 epilogue) ----
    x = x_ref[...].astype(compute_dtype)                     # (TB, F)
    w1 = w1_ref[...].astype(compute_dtype)                   # (F, H)
    h = jnp.dot(x, w1, preferred_element_type=jnp.float32)   # (TB, H) f32 acc
    h = jnp.tanh(h + b1_ref[...])                            # f32 bias + EUP tanh

    w2 = w2_ref[...].astype(compute_dtype)                   # (H, LANE) padded
    q = jnp.dot(h.astype(compute_dtype), w2,
                preferred_element_type=jnp.float32) + b2_ref[...]   # (TB, LANE)
    q_ref[...] = q.astype(q_ref.dtype)                        # lane-dense store

    # ---- Fused greedy action: first-max index over the real A columns ----
    col = lax.broadcasted_iota(jnp.int32, q.shape, 1)          # (TB, LANE)
    valid = col < n_actions
    masked = jnp.where(valid, q, jnp.full_like(q, -jnp.inf))   # hide padding
    qmax = jnp.max(masked, axis=-1, keepdims=True)             # (TB, 1)
    first_max = jnp.min(jnp.where(masked >= qmax, col, q.shape[-1]),
                        axis=-1, keepdims=True)                # torch tie-break
    act_ref[...] = first_max.astype(jnp.int32)                 # (TB, 1)


@functools.partial(jax.jit, static_argnames=("block_b", "compute_dtype"))
def network_forward_and_act(x, w1, b1, w2, b2, *, block_b=128,
                            compute_dtype=jnp.bfloat16):
    """Returns (q_values (B, A) f32, greedy_actions (B,) int32)."""
    B, F = x.shape
    H = w1.shape[1]
    A = w2.shape[1]
    assert A <= LANE, "action dim must fit in one lane register"

    # Pad the action axis of W2/b2 with zeros -> lane-dense Q output.
    w2p = jnp.zeros((H, LANE), w2.dtype).at[:, :A].set(w2)
    b2p = jnp.zeros((1, LANE), b2.dtype).at[:, :A].set(b2.reshape(1, A))
    b1r = b1.reshape(1, H)

    # Pad the batch so it tiles evenly; padded rows are sliced off at the end.
    n_blk = pl.cdiv(B, block_b)
    Bp = n_blk * block_b
    if Bp != B:
        x = jnp.pad(x, ((0, Bp - B), (0, 0)))

    kernel = functools.partial(mlp_argmax_kernel, n_actions=A,
                               compute_dtype=compute_dtype)

    flops = 2 * Bp * (F * H + H * LANE)
    bytes_accessed = 4 * (Bp * F + F * H + H + H * LANE + LANE
                          + Bp * LANE + Bp)

    q_pad, act_pad = pl.pallas_call(
        kernel,
        out_shape=(jax.ShapeDtypeStruct((Bp, LANE), jnp.float32),
                   jax.ShapeDtypeStruct((Bp, 1), jnp.int32)),
        grid_spec=pltpu.PrefetchScalarGridSpec(
            num_scalar_prefetch=0,
            grid=(n_blk,),
            in_specs=[
                pl.BlockSpec((block_b, F), lambda i: (i, 0)),   # x tile per step
                pl.BlockSpec((F, H), lambda i: (0, 0)),         # W1 resident
                pl.BlockSpec((1, H), lambda i: (0, 0)),         # b1 resident
                pl.BlockSpec((H, LANE), lambda i: (0, 0)),      # W2 (padded) resident
                pl.BlockSpec((1, LANE), lambda i: (0, 0)),      # b2 (padded) resident
            ],
            out_specs=(
                pl.BlockSpec((block_b, LANE), lambda i: (i, 0)),  # Q, lane-dense
                pl.BlockSpec((block_b, 1), lambda i: (i, 0)),     # greedy action
            ),
        ),
        compiler_params=pltpu.CompilerParams(
            dimension_semantics=("parallel",),        # megacore sharding on v7x
            vmem_limit_bytes=32 * 1024 * 1024,
        ),
        cost_estimate=pl.CostEstimate(flops=flops,
                                      transcendentals=Bp * H,
                                      bytes_accessed=bytes_accessed),
    )(x, w1, b1r, w2p, b2p)

    return q_pad[:B, :A], act_pad[:B, 0]


def network_forward(x, w1, b1, w2, b2, **kw):
    """Equivalent of Network.forward: q = Linear2(tanh(Linear1(x)))."""
    q, _ = network_forward_and_act(x, w1, b1, w2, b2, **kw)
    return q


def act_batch(obs_batch, w1, b1, w2, b2, **kw):
    """Greedy actions for a batch of observations; stays on device (no host sync)."""
    _, actions = network_forward_and_act(obs_batch, w1, b1, w2, b2, **kw)
    return actions


def act(obs, w1, b1, w2, b2, **kw):
    """Network.act for a single observation: one device call, one host pull at the end."""
    obs_t = jnp.asarray(obs, dtype=jnp.float32).reshape(1, -1)
    _, actions = network_forward_and_act(obs_t, w1, b1, w2, b2, **kw)
    return int(actions[0])   # host transfer only at the env-step boundary


def init_params(key, in_features, hidden, n_actions):
    """PyTorch nn.Linear-style init: U[-1/sqrt(fan_in), +1/sqrt(fan_in)]; weights stored (in, out)."""
    k1, k2, k3, k4 = jax.random.split(key, 4)
    bound1 = 1.0 / jnp.sqrt(jnp.float32(in_features))
    bound2 = 1.0 / jnp.sqrt(jnp.float32(hidden))
    w1 = jax.random.uniform(k1, (in_features, hidden), jnp.float32, -bound1, bound1)
    b1 = jax.random.uniform(k2, (1, hidden), jnp.float32, -bound1, bound1)
    w2 = jax.random.uniform(k3, (hidden, n_actions), jnp.float32, -bound2, bound2)
    b2 = jax.random.uniform(k4, (1, n_actions), jnp.float32, -bound2, bound2)
    return w1, b1, w2, b2


if __name__ == "__main__":
    key = jax.random.PRNGKey(0)
    # Obs dim 4 (CartPole-like), hidden 64 (fixed in the module), 2 actions.
    # Batched observations (vectorized envs / replay batch) so the B-grid is exercised.
    B, F, H, A = 256, 4, 64, 2
    TB = 128

    k_obs, k_params = jax.random.split(key)
    x = jax.random.normal(k_obs, (B, F), dtype=jnp.float32)
    w1, b1, w2, b2 = init_params(k_params, F, H, A)

    # Plain-JAX reference (same math as the PyTorch module).
    q_ref = jnp.tanh(x @ w1 + b1) @ w2 + b2
    a_ref = jnp.argmax(q_ref, axis=-1).astype(jnp.int32)

    # f32 matmul path: exact check.
    q32, a32 = network_forward_and_act(x, w1, b1, w2, b2,
                                       block_b=TB, compute_dtype=jnp.float32)
    q32, a32 = jax.block_until_ready((q32, a32))
    assert q32.shape == (B, A) and a32.shape == (B,)
    assert jnp.allclose(q32, q_ref, atol=1e-5), "f32 mismatch vs reference"
    assert jnp.array_equal(a32, a_ref), "argmax mismatch vs reference"

    # Default bf16-matmul path (MXU-native on v6e/v7x), f32 bias+tanh epilogue.
    qbf, abf = network_forward_and_act(x, w1, b1, w2, b2, block_b=TB)
    qbf, abf = jax.block_until_ready((qbf, abf))
    assert jnp.allclose(qbf, q_ref, atol=5e-2), "bf16 mismatch vs reference"

    # Single-observation greedy action path (the `Network.act` equivalent).
    _ = act(x[0], w1, b1, w2, b2)

    # TODO(synk): the replay-buffer / training loop of the original script is host-side
    # RL plumbing, not part of the module forward pass, and is intentionally not ported.
    print("KERNEL_OK")
</pallas_src>

<mosaic_0001>
module attributes {stable_mosaic.version = 11 : i64} {
  func.func @mlp_argmax_kernel(%arg0: i32, %arg1: memref<128x4xf32, #tpu.memory_space<vmem>>, %arg2: memref<4x64xf32, #tpu.memory_space<vmem>>, %arg3: memref<1x64xf32, #tpu.memory_space<vmem>>, %arg4: memref<64x128xf32, #tpu.memory_space<vmem>>, %arg5: memref<1x128xf32, #tpu.memory_space<vmem>>, %arg6: memref<128x128xf32, #tpu.memory_space<vmem>>, %arg7: memref<128x1xi32, #tpu.memory_space<vmem>>) attributes {dimension_semantics = [#tpu.dimension_semantics<parallel>], iteration_bounds = array<i64: 2>, scalar_prefetch = 0 : i64, scratch_operands = 0 : i64, tpu.core_type = #tpu.core_type<tc>, window_params = [{transform_indices = @transform_0, window_bounds = array<i64: 128, 4>}, {pipeline_mode = #tpu.pipeline_mode<synchronous>, transform_indices = @transform_1, window_bounds = array<i64: 4, 64>}, {pipeline_mode = #tpu.pipeline_mode<synchronous>, transform_indices = @transform_2, window_bounds = array<i64: 1, 64>}, {pipeline_mode = #tpu.pipeline_mode<synchronous>, transform_indices = @transform_3, window_bounds = array<i64: 64, 128>}, {pipeline_mode = #tpu.pipeline_mode<synchronous>, transform_indices = @transform_4, window_bounds = array<i64: 1, 128>}, {transform_indices = @transform_5, window_bounds = array<i64: 128, 128>}, {transform_indices = @transform_6, window_bounds = array<i64: 128, 1>}]} {
    %c0 = arith.constant 0 : index
    %c0_0 = arith.constant 0 : index
    %0 = vector.load %arg1[%c0, %c0_0] : memref<128x4xf32, #tpu.memory_space<vmem>>, vector<128x4xf32>
    %c0_1 = arith.constant 0 : index
    %c0_2 = arith.constant 0 : index
    %1 = vector.load %arg2[%c0_1, %c0_2] : memref<4x64xf32, #tpu.memory_space<vmem>>, vector<4x64xf32>
    %cst = arith.constant dense<0.000000e+00> : vector<128x64xf32>
    %2 = tpu.matmul %0, %1, %cst {dimension_numbers = #tpu.dot_dimension_numbers<[1], [0], [0], [1], [0, 0, 1, 1], [], []>} : vector<128x4xf32>, vector<4x64xf32>, vector<128x64xf32> -> vector<128x64xf32>
    %c0_3 = arith.constant 0 : index
    %c0_4 = arith.constant 0 : index
    %3 = vector.load %arg3[%c0_3, %c0_4] : memref<1x64xf32, #tpu.memory_space<vmem>>, vector<1x64xf32>
    %4 = vector.broadcast %3 : vector<1x64xf32> to vector<128x64xf32>
    %5 = arith.addf %2, %4 : vector<128x64xf32>
    %6 = math.tanh %5 : vector<128x64xf32>
    %c0_5 = arith.constant 0 : index
    %c0_6 = arith.constant 0 : index
    %7 = vector.load %arg4[%c0_5, %c0_6] : memref<64x128xf32, #tpu.memory_space<vmem>>, vector<64x128xf32>
    %cst_7 = arith.constant dense<0.000000e+00> : vector<128x128xf32>
    %8 = tpu.matmul %6, %7, %cst_7 {dimension_numbers = #tpu.dot_dimension_numbers<[1], [0], [0], [1], [0, 0, 1, 1], [], []>} : vector<128x64xf32>, vector<64x128xf32>, vector<128x128xf32> -> vector<128x128xf32>
    %c0_8 = arith.constant 0 : index
    %c0_9 = arith.constant 0 : index
    %9 = vector.load %arg5[%c0_8, %c0_9] : memref<1x128xf32, #tpu.memory_space<vmem>>, vector<1x128xf32>
    %10 = vector.broadcast %9 : vector<1x128xf32> to vector<128x128xf32>
    %11 = arith.addf %8, %10 : vector<128x128xf32>
    %c0_10 = arith.constant 0 : index
    %c0_11 = arith.constant 0 : index
    %12 = vector.load %arg6[%c0_10, %c0_11] : memref<128x128xf32, #tpu.memory_space<vmem>>, vector<128x128xf32>
    tpu.vector_store %arg6[%c0_10, %c0_11], %11 {strides = array<i32>} : memref<128x128xf32, #tpu.memory_space<vmem>>, vector<128x128xf32>,
    %13 = tpu.iota {dimensions = array<i32: 1>} : vector<128x128xi32>
    %c2_i32 = arith.constant 2 : i32
    %14 = vector.broadcast %c2_i32 : i32 to vector<128x128xi32>
    %15 = arith.cmpi slt, %13, %14 : vector<128x128xi32>
    %cst_12 = arith.constant 0xFF800000 : f32
    %16 = vector.broadcast %cst_12 : f32 to vector<128x128xf32>
    %17 = arith.select %15, %11, %16 : vector<128x128xi1>, vector<128x128xf32>
    %cst_13 = arith.constant dense<0xFF800000> : vector<128xf32>
    %18 = vector.multi_reduction <maximumf>, %17, %cst_13 [1] : vector<128x128xf32> to vector<128xf32>
    %19 = vector.shape_cast %18 : vector<128xf32> to vector<128x1xf32>
    %20 = vector.broadcast %19 : vector<128x1xf32> to vector<128x128xf32>
    %21 = arith.cmpf oge, %17, %20 : vector<128x128xf32>
    %c128_i32 = arith.constant 128 : i32
    %22 = vector.broadcast %c128_i32 : i32 to vector<128x128xi32>
    %23 = arith.select %21, %13, %22 : vector<128x128xi1>, vector<128x128xi32>
    %cst_14 = arith.constant dense<2147483647> : vector<128xi32>
    %24 = vector.multi_reduction <minsi>, %23, %cst_14 [1] : vector<128x128xi32> to vector<128xi32>
    %25 = vector.shape_cast %24 : vector<128xi32> to vector<128x1xi32>
    %c0_15 = arith.constant 0 : index
    %c0_16 = arith.constant 0 : index
    %26 = vector.load %arg7[%c0_15, %c0_16] : memref<128x1xi32, #tpu.memory_space<vmem>>, vector<128x1xi32>
    tpu.vector_store %arg7[%c0_15, %c0_16], %25 {strides = array<i32>} : memref<128x1xi32, #tpu.memory_space<vmem>>, vector<128x1xi32>,
    return
  }
  func.func @transform_0(%arg0: i32) -> (i32, i32) {
    %c0_i32 = arith.constant 0 : i32
    %c0_i32_0 = arith.constant 0 : i32
    return %arg0, %c0_i32 : i32, i32
  }
  func.func @transform_1(%arg0: i32) -> (i32, i32) {
    %c0_i32 = arith.constant 0 : i32
    %c0_i32_0 = arith.constant 0 : i32
    %c0_i32_1 = arith.constant 0 : i32
    return %c0_i32, %c0_i32_0 : i32, i32
  }
  func.func @transform_2(%arg0: i32) -> (i32, i32) {
    %c0_i32 = arith.constant 0 : i32
    %c0_i32_0 = arith.constant 0 : i32
    %c0_i32_1 = arith.constant 0 : i32
    return %c0_i32, %c0_i32_0 : i32, i32
  }
  func.func @transform_3(%arg0: i32) -> (i32, i32) {
    %c0_i32 = arith.constant 0 : i32
    %c0_i32_0 = arith.constant 0 : i32
    %c0_i32_1 = arith.constant 0 : i32
    return %c0_i32, %c0_i32_0 : i32, i32
  }
  func.func @transform_4(%arg0: i32) -> (i32, i32) {
    %c0_i32 = arith.constant 0 : i32
    %c0_i32_0 = arith.constant 0 : i32
    %c0_i32_1 = arith.constant 0 : i32
    return %c0_i32, %c0_i32_0 : i32, i32
  }
  func.func @transform_5(%arg0: i32) -> (i32, i32) {
    %c0_i32 = arith.constant 0 : i32
    %c0_i32_0 = arith.constant 0 : i32
    return %arg0, %c0_i32 : i32, i32
  }
  func.func @transform_6(%arg0: i32) -> (i32, i32) {
    %c0_i32 = arith.constant 0 : i32
    %c0_i32_0 = arith.constant 0 : i32
    return %arg0, %c0_i32 : i32, i32
  }
}

</mosaic_0001>

<llo_original>
// kernel: network_forward_and_act.1
$region0: #{network_forward_and_act.1}
  #allocation0 [shape = 'u32[]', space=smem, size = 0x4, offset = 0x4, fixed_abs, tag = 'smem constant byte address 0x4 - core index']
  #allocation1 [shape = 'u32[144,128]{1,0:T(1,128)}', space=vmem, size = 0x12000, scoped, tag = 'internal scratch']
  %s0 = inlined_call_operand.vmem [shape: f32[256,4], index: 0, kind: input, shape index: {}]
  %s1 = inlined_call_operand.vmem [shape: f32[4,64], index: 1, kind: input, shape index: {}]
  %s2 = inlined_call_operand.vmem [shape: f32[1,64], index: 2, kind: input, shape index: {}]
  %s3 = inlined_call_operand.vmem [shape: f32[64,128], index: 3, kind: input, shape index: {}]
  %s4 = inlined_call_operand.vmem [shape: f32[1,128], index: 4, kind: input, shape index: {}]
  %s5 = inlined_call_operand.vmem [shape: f32[256,128], index: 5, kind: output, shape index: {0}]
  %s6 = inlined_call_operand.vmem [shape: s32[256,1], index: 6, kind: output, shape index: {1}]
  %7 = xla_tuple %s5, %s6
  %s8 = sld [smem:[#allocation0]]
  $region61: #{network_forward_and_act.1} parent=0
    _
  %s10 = ssub.s32 1, %s8
  %s11 = scalar_select 0, %s10, %s8
  loop: start=0, step=1, limit=4
  $region2: #{network_forward_and_act.1} parent=0 // loop_pre_header
    _
  $region3: #{network_forward_and_act.1} parent=0 // loop_header
    %s13 = sphi 0, %s17
    %p14 = scmp.ge.s32.totalorder %s13, 4
    %s23 = sphi 0, %s25
    %s26 = sphi 0, %s23
    %s27 = sphi 0, %s26
    %s43 = sphi 0, %s27
    %s47 = sphi 0, %s47
    %s49 = sphi 0, %s47
    %s50 = sphi 0, %s49
    %s64 = sphi 0, %s50
    %s68 = sphi 0, %s68
    %s70 = sphi 0, %s68
    %s71 = sphi 0, %s70
    %s85 = sphi 0, %s71
    %s89 = sphi 0, %s89
    %s91 = sphi 0, %s89
    %s92 = sphi 0, %s91
    %s106 = sphi 0, %s92
    %s110 = sphi 0, %s110
    %s112 = sphi 0, %s110
    %s113 = sphi 0, %s112
    %s127 = sphi 0, %s113
    %s133 = sphi 0, %s135
    %s136 = sphi 0, %s133
    %s137 = sphi 0, %s136
    %s153 = sphi 0, %s137
    %s159 = sphi 0, %s161
    %s162 = sphi 0, %s159
    %s163 = sphi 0, %s162
    %s179 = sphi 0, %s163
  $region4: #{network_forward_and_act.1} parent=0 // loop_header_branch
    %16 = sbr.rel (%p14) target = $region8
  $region5: #{network_forward_and_act.1} parent=0 // loop_body
    %s18 = ssub.s32 %s13, 1
    %s19 = ssub.s32 %s13, 2
    %s20 = sadd.s32 %s13, 1
    %s21 = ssub.s32 %s13, %s20
    %p22 = scmp.eq.s32.totalorder %s21, 0
    %s24 = sadd.s32 %s23, 1
    %s25 = scalar_select %p22, %s23, %s24
    %p28 = pneg %p22
    %p29 = scmp.eq.s32.totalorder %s13, 1
    %p30 = por %p28, %p29
    %p31 = scmp.ne.s32.totalorder %s23, %s26
    %p32 = scmp.eq.s32.totalorder %s13, 0
    %p33 = por %p31, %p32
    %p34 = scmp.ne.s32.totalorder %s23, %s26
    %p35 = scmp.eq.s32.totalorder %s18, 1
    %p36 = por %p34, %p35
    %p37 = scmp.ne.s32.totalorder %s26, %s27
    %p38 = scmp.eq.s32.totalorder %s18, 0
    %p39 = por %p37, %p38
    %p40 = scmp.ne.s32.totalorder %s26, %s27
    %p41 = scmp.eq.s32.totalorder %s19, 1
    %p42 = por %p40, %p41
    %p44 = scmp.ne.s32.totalorder %s27, %s43
    %p45 = scmp.eq.s32.totalorder %s19, 0
    %p46 = por %p44, %p45
    %s48 = sadd.s32 %s47, 1
    %p51 = scmp.eq.s32.totalorder %s13, 1
    %p52 = scmp.ne.s32.totalorder %s47, %s49
    %p53 = scmp.eq.s32.totalorder %s13, 0
    %p54 = por %p52, %p53
    %p55 = scmp.ne.s32.totalorder %s47, %s49
    %p56 = scmp.eq.s32.totalorder %s18, 1
    %p57 = por %p55, %p56
    %p58 = scmp.ne.s32.totalorder %s49, %s50
    %p59 = scmp.eq.s32.totalorder %s18, 0
    %p60 = por %p58, %p59
    %p61 = scmp.ne.s32.totalorder %s49, %s50
    %p62 = scmp.eq.s32.totalorder %s19, 1
    %p63 = por %p61, %p62
    %p65 = scmp.ne.s32.totalorder %s50, %s64
    %p66 = scmp.eq.s32.totalorder %s19, 0
    %p67 = por %p65, %p66
    %s69 = sadd.s32 %s68, 1
    %p72 = scmp.eq.s32.totalorder %s13, 1
    %p73 = scmp.ne.s32.totalorder %s68, %s70
    %p74 = scmp.eq.s32.totalorder %s13, 0
    %p75 = por %p73, %p74
    %p76 = scmp.ne.s32.totalorder %s68, %s70
    %p77 = scmp.eq.s32.totalorder %s18, 1
    %p78 = por %p76, %p77
    %p79 = scmp.ne.s32.totalorder %s70, %s71
    %p80 = scmp.eq.s32.totalorder %s18, 0
    %p81 = por %p79, %p80
    %p82 = scmp.ne.s32.totalorder %s70, %s71
    %p83 = scmp.eq.s32.totalorder %s19, 1
    %p84 = por %p82, %p83
    %p86 = scmp.ne.s32.totalorder %s71, %s85
    %p87 = scmp.eq.s32.totalorder %s19, 0
    %p88 = por %p86, %p87
    %s90 = sadd.s32 %s89, 1
    %p93 = scmp.eq.s32.totalorder %s13, 1
    %p94 = scmp.ne.s32.totalorder %s89, %s91
    %p95 = scmp.eq.s32.totalorder %s13, 0
    %p96 = por %p94, %p95
    %p97 = scmp.ne.s32.totalorder %s89, %s91
    %p98 = scmp.eq.s32.totalorder %s18, 1
    %p99 = por %p97, %p98
    %p100 = scmp.ne.s32.totalorder %s91, %s92
    %p101 = scmp.eq.s32.totalorder %s18, 0
    %p102 = por %p100, %p101
    %p103 = scmp.ne.s32.totalorder %s91, %s92
    %p104 = scmp.eq.s32.totalorder %s19, 1
    %p105 = por %p103, %p104
    %p107 = scmp.ne.s32.totalorder %s92, %s106
    %p108 = scmp.eq.s32.totalorder %s19, 0
    %p109 = por %p107, %p108
    %s111 = sadd.s32 %s110, 1
    %p114 = scmp.eq.s32.totalorder %s13, 1
    %p115 = scmp.ne.s32.totalorder %s110, %s112
    %p116 = scmp.eq.s32.totalorder %s13, 0
    %p117 = por %p115, %p116
    %p118 = scmp.ne.s32.totalorder %s110, %s112
    %p119 = scmp.eq.s32.totalorder %s18, 1
    %p120 = por %p118, %p119
    %p121 = scmp.ne.s32.totalorder %s112, %s113
    %p122 = scmp.eq.s32.totalorder %s18, 0
    %p123 = por %p121, %p122
    %p124 = scmp.ne.s32.totalorder %s112, %s113
    %p125 = scmp.eq.s32.totalorder %s19, 1
    %p126 = por %p124, %p125
    %p128 = scmp.ne.s32.totalorder %s113, %s127
    %p129 = scmp.eq.s32.totalorder %s19, 0
    %p130 = por %p128, %p129
    %s131 = ssub.s32 %s13, %s20
    %p132 = scmp.eq.s32.totalorder %s131, 0
    %s134 = sadd.s32 %s133, 1
    %s135 = scalar_select %p132, %s133, %s134
    %p138 = pneg %p132
    %p139 = scmp.eq.s32.totalorder %s13, 1
    %p140 = por %p138, %p139
    %p141 = scmp.ne.s32.totalorder %s133, %s136
    %p142 = scmp.eq.s32.totalorder %s13, 0
    %p143 = por %p141, %p142
    %p144 = scmp.ne.s32.totalorder %s133, %s136
    %p145 = scmp.eq.s32.totalorder %s18, 1
    %p146 = por %p144, %p145
    %p147 = scmp.ne.s32.totalorder %s136, %s137
    %p148 = scmp.eq.s32.totalorder %s18, 0
    %p149 = por %p147, %p148
    %p150 = scmp.ne.s32.totalorder %s136, %s137
    %p151 = scmp.eq.s32.totalorder %s19, 1
    %p152 = por %p150, %p151
    %p154 = scmp.ne.s32.totalorder %s137, %s153
    %p155 = scmp.eq.s32.totalorder %s19, 0
    %p156 = por %p154, %p155
    %s157 = ssub.s32 %s13, %s20
    %p158 = scmp.eq.s32.totalorder %s157, 0
    %s160 = sadd.s32 %s159, 1
    %s161 = scalar_select %p158, %s159, %s160
    %p164 = pneg %p158
    %p165 = scmp.eq.s32.totalorder %s13, 1
    %p166 = por %p164, %p165
    %p167 = scmp.ne.s32.totalorder %s159, %s162
    %p168 = scmp.eq.s32.totalorder %s13, 0
    %p169 = por %p167, %p168
    %p170 = scmp.ne.s32.totalorder %s159, %s162
    %p171 = scmp.eq.s32.totalorder %s18, 1
    %p172 = por %p170, %p171
    %p173 = scmp.ne.s32.totalorder %s162, %s163
    %p174 = scmp.eq.s32.totalorder %s18, 0
    %p175 = por %p173, %p174
    %p176 = scmp.ne.s32.totalorder %s162, %s163
    %p177 = scmp.eq.s32.totalorder %s19, 1
    %p178 = por %p176, %p177
    %p180 = scmp.ne.s32.totalorder %s163, %s179
    %p181 = scmp.eq.s32.totalorder %s19, 0
    %p182 = por %p180, %p181
    %p183 = scmp.le.s32.totalorder 1, %s13
    %p184 = scmp.lt.s32.totalorder %s13, 3
    %p185 = pnand %p183, %p184
    %p186 = pneg %p185
    // Predicated region
    $region9: #{network_forward_and_act.1} parent=5 // pred_check
      _
    $region10: #{network_forward_and_act.1} parent=5 // pred_check_branch
      %188 = sbr.rel (%p185) target = $region12
    $region11: #{network_forward_and_act.1} parent=5 // pred_region
      %s189 = ssub.s32 %s13, 1
      // Predicated region
      $region13: #{network_forward_and_act.1} parent=11 // pred_check
        %p190 = pneg %p60
      $region14: #{network_forward_and_act.1} parent=11 // pred_check_branch
        %192 = sbr.rel (%p190) target = $region16
      $region15: #{network_forward_and_act.1} parent=11 // pred_region
        _
      $region16: #{network_forward_and_act.1} parent=11 // pred_fallthru
        _
      // Predicated region
      $region17: #{network_forward_and_act.1} parent=11 // pred_check
        %p193 = pneg %p81
      $region18: #{network_forward_and_act.1} parent=11 // pred_check_branch
        %195 = sbr.rel (%p193) target = $region20
      $region19: #{network_forward_and_act.1} parent=11 // pred_region
        _
      $region20: #{network_forward_and_act.1} parent=11 // pred_fallthru
        _
      // Predicated region
      $region21: #{network_forward_and_act.1} parent=11 // pred_check
        %p196 = pneg %p102
      $region22: #{network_forward_and_act.1} parent=11 // pred_check_branch
        %198 = sbr.rel (%p196) target = $region24
      $region23: #{network_forward_and_act.1} parent=11 // pred_region
        _
      $region24: #{network_forward_and_act.1} parent=11 // pred_fallthru
        _
      // Predicated region
      $region25: #{network_forward_and_act.1} parent=11 // pred_check
        %p199 = pneg %p123
      $region26: #{network_forward_and_act.1} parent=11 // pred_check_branch
        %201 = sbr.rel (%p199) target = $region28
      $region27: #{network_forward_and_act.1} parent=11 // pred_region
        _
      $region28: #{network_forward_and_act.1} parent=11 // pred_fallthru
        _
    $region12: #{network_forward_and_act.1} parent=5 // pred_fallthru
      _
    %p202 = scmp.lt.s32.totalorder %s13, 2
    // Predicated region
    $region29: #{network_forward_and_act.1} parent=5 // pred_check
      %p203 = pneg %p202
    $region30: #{network_forward_and_act.1} parent=5 // pred_check_branch
      %205 = sbr.rel (%p203) target = $region32
    $region31: #{network_forward_and_act.1} parent=5 // pred_region
      // Predicated region
      $region33: #{network_forward_and_act.1} parent=31 // pred_check
        %p206 = pneg %p33
      $region34: #{network_forward_and_act.1} parent=31 // pred_check_branch
        %208 = sbr.rel (%p206) target = $region36
      $region35: #{network_forward_and_act.1} parent=31 // pred_region
        %s209 = smul.u32 16, %s13
        %p210 = scmp.lt.s32.totalorder %s209, 31
        %s211 = scalar_select %p210, %s209, 31
        %s212 = smul.addr %s211, 8
        %s213 = scalar_lea.vmem %s0, %s212
        %s214 = smul.u32 16, %s13
      $region36: #{network_forward_and_act.1} parent=31 // pred_fallthru
        _
    $region32: #{network_forward_and_act.1} parent=5 // pred_fallthru
      _
    %p215 = scmp.le.s32.totalorder 1, %s13
    %p216 = scmp.lt.s32.totalorder %s13, 3
    %p217 = pnand %p215, %p216
    %p218 = pneg %p217
    // Predicated region
    $region37: #{network_forward_and_act.1} parent=5 // pred_check
      _
    $region38: #{network_forward_and_act.1} parent=5 // pred_check_branch
      %220 = sbr.rel (%p217) target = $region40
    $region39: #{network_forward_and_act.1} parent=5 // pred_region
      %s221 = ssub.s32 %s13, 1
      %s222 = smul.u32 16, %s18
      %p223 = scmp.lt.s32.totalorder %s222, 31
      %s224 = scalar_select %p223, %s222, 31
      %s225 = smul.addr %s224, 8
      %s226 = scalar_lea.vmem %s0, %s225
      %p227 = pneg %p39
      %p228 = pneg %p36
      %p229 = pneg %p60
      %p230 = pneg %p57
      %p231 = pneg %p81
      %p232 = pneg %p78
      %p233 = pneg %p102
      %p234 = pneg %p99
      %p235 = pneg %p123
      %p236 = pneg %p120
      %p237 = pneg %p149
      %p238 = pneg %p146
      %s239 = smul.u32 16, %s18
      %p240 = scmp.lt.s32.totalorder %s239, 31
      %s241 = scalar_select %p240, %s239, 31
      %s242 = smul.addr %s241, 8
      %s243 = scalar_lea.vmem %s5, %s242
      %p244 = pneg %p175
      %p245 = pneg %p172
      %s246 = smul.u32 16, %s18
      %p247 = scmp.lt.s32.totalorder %s246, 31
      %s248 = scalar_select %p247, %s246, 31
      %s249 = smul.addr %s248, 8
      %s250 = scalar_lea.vmem %s6, %s249
      %s251 = smul.u32 16, %s18
      %p252 = scmp.lt.s32.totalorder %s251, 31
      %s253 = scalar_select %p252, %s251, 31
      %s254 = smul.addr %s253, 8
      %s255 = scalar_lea.vmem %s0, %s254
      %s256 = smul.u32 16, %s18
      %s257 = smul.u32 16, %s18
      %p258 = scmp.lt.s32.totalorder %s257, 31
      %s259 = scalar_select %p258, %s257, 31
      %s260 = smul.addr %s259, 8
      %s261 = scalar_lea.vmem %s5, %s260
      %s262 = smul.u32 16, %s18
      %s263 = smul.u32 16, %s18
      %p264 = scmp.lt.s32.totalorder %s263, 31
      %s265 = scalar_select %p264, %s263, 31
      %s266 = smul.addr %s265, 8
      %s267 = scalar_lea.vmem %s6, %s266
      %s268 = smul.u32 16, %s18
      %v269 = vld [vmem:[%s255] sm:$0xff]
      %v270 = vld [vmem:[%s255 + $0x8] sm:$0xff]
      %v271 = vld [vmem:[%s255 + $0x10] sm:$0xff]
      %v272 = vld [vmem:[%s255 + $0x18] sm:$0xff]
      %v273 = vld [vmem:[%s255 + $0x20] sm:$0xff]
      %v274 = vld [vmem:[%s255 + $0x28] sm:$0xff]
      %v275 = vld [vmem:[%s255 + $0x30] sm:$0xff]
      %v276 = vld [vmem:[%s255 + $0x38] sm:$0xff]
      %v277 = vld [vmem:[%s255 + $0x40] sm:$0xff]
      %v278 = vld [vmem:[%s255 + $0x48] sm:$0xff]
      %v279 = vld [vmem:[%s255 + $0x50] sm:$0xff]
      %v280 = vld [vmem:[%s255 + $0x58] sm:$0xff]
      %v281 = vld [vmem:[%s255 + $0x60] sm:$0xff]
      %v282 = vld [vmem:[%s255 + $0x68] sm:$0xff]
      %v283 = vld [vmem:[%s255 + $0x70] sm:$0xff]
      %v284 = vld [vmem:[%s255 + $0x78] sm:$0xff]
      %v285 = vld [vmem:[%s1] sm:$0xf]
      %v286 = vld [vmem:[%s2] sm:$0x1]
      %v288 = vlaneseq
      %v289 = vshrl.u32 %v288, 7
      %v290 = vsub.s32 0, %v289
      %v291 = vrot.slane %v286, %v290
      %vm293 = vcmask 31744
      %v295 = vsel %vm293, %v269, 0
      %v298 = vsel %vm293, %v270, 0
      %v301 = vsel %vm293, %v271, 0
      %v304 = vsel %vm293, %v272, 0
      %v307 = vsel %vm293, %v273, 0
      %v310 = vsel %vm293, %v274, 0
      %v313 = vsel %vm293, %v275, 0
      %v316 = vsel %vm293, %v276, 0
      %v319 = vsel %vm293, %v277, 0
      %v322 = vsel %vm293, %v278, 0
      %v325 = vsel %vm293, %v279, 0
      %v328 = vsel %vm293, %v280, 0
      %v331 = vsel %vm293, %v281, 0
      %v334 = vsel %vm293, %v282, 0
      %v337 = vsel %vm293, %v283, 0
      %v340 = vsel %vm293, %v284, 0
      %vm342 = vcmask 1043456
      %v344 = vsel %vm342, %v285, 0
      %346 = vmatprep.subr.mxu0 0.0
      %347 = vmatpush1.msra.mxu0 %v344
      %348 = vmatprep.subr.mxu0 0.0
      %349 = vmatpush1.msra.mxu0 0.0
      %350 = vmatprep.subr.mxu0 0.0
      %351 = vmatpush1.msra.mxu0 0.0
      %352 = vmatprep.subr.mxu0 0.0
      %353 = vmatpush1.msra.mxu0 0.0
      %354 = vmatprep.subr.mxu0 0.0
      %355 = vmatpush1.msra.mxu0 0.0
      %356 = vmatprep.subr.mxu0 0.0
      %357 = vmatpush1.msra.mxu0 0.0
      %358 = vmatprep.subr.mxu0 0.0
      %359 = vmatpush1.msra.mxu0 0.0
      %360 = vmatprep.subr.mxu0 0.0
      %361 = vmatpush1.msra.mxu0 0.0
      %362 = vmatprep.subr.mxu0 0.0
      %363 = vmatpush1.msra.mxu0 0.0
      %364 = vmatprep.subr.mxu0 0.0
      %365 = vmatpush1.msra.mxu0 0.0
      %366 = vmatprep.subr.mxu0 0.0
      %367 = vmatpush1.msra.mxu0 0.0
      %368 = vmatprep.subr.mxu0 0.0
      %369 = vmatpush1.msra.mxu0 0.0
      %370 = vmatprep.subr.mxu0 0.0
      %371 = vmatpush1.msra.mxu0 0.0
      %372 = vmatprep.subr.mxu0 0.0
      %373 = vmatpush1.msra.mxu0 0.0
      %374 = vmatprep.subr.mxu0 0.0
      %375 = vmatpush1.msra.mxu0 0.0
      %376 = vmatprep.subr.mxu0 0.0
      %377 = vmatpush1.msra.mxu0 0.0
      %378 = vmatprep.subr.mxu0 0.0
      %379 = vmatpush1.msra.mxu0 0.0
      %380 = vmatprep.subr.mxu0 0.0
      %381 = vmatpush1.msra.mxu0 0.0
      %382 = vmatprep.subr.mxu0 0.0
      %383 = vmatpush1.msra.mxu0 0.0
      %384 = vmatprep.subr.mxu0 0.0
      %385 = vmatpush1.msra.mxu0 0.0
      %386 = vmatprep.subr.mxu0 0.0
      %387 = vmatpush1.msra.mxu0 0.0
      %388 = vmatprep.subr.mxu0 0.0
      %389 = vmatpush1.msra.mxu0 0.0
      %390 = vmatprep.subr.mxu0 0.0
      %391 = vmatpush1.msra.mxu0 0.0
      %392 = vmatprep.subr.mxu0 0.0
      %393 = vmatpush1.msra.mxu0 0.0
      %394 = vmatprep.subr.mxu0 0.0
      %395 = vmatpush1.msra.mxu0 0.0
      %396 = vmatprep.subr.mxu0 0.0
      %397 = vmatpush1.msra.mxu0 0.0
      %398 = vmatprep.subr.mxu0 0.0
      %399 = vmatpush1.msra.mxu0 0.0
      %400 = vmatprep.subr.mxu0 0.0
      %401 = vmatpush1.msra.mxu0 0.0
      %402 = vmatprep.subr.mxu0 0.0
      %403 = vmatpush1.msra.mxu0 0.0
      %404 = vmatprep.subr.mxu0 0.0
      %405 = vmatpush1.msra.mxu0 0.0
      %406 = vmatprep.subr.mxu0 0.0
      %407 = vmatpush1.msra.mxu0 0.0
      %408 = vmatprep.subr.mxu0 0.0
      %409 = vmatpush1.msra.mxu0 0.0
      %410 = vmatprep.mubr.f32.mxu0 0.0
      %411 = vmatmul.mubr.f32.gmra.mrb[0].mxu0 %v295
      %v412 = vpop.f32.mrb[0].mxu0
      %v413 = vadd.f32 %v291, %v412
      %v414 = vpop.f32.mrb[0].mxu0
      %415 = vmatprep.mubr.f32.mxu0 0.0
      %416 = vmatmul.mubr.f32.gmra.mrb[0].mxu0 %v298
      %v417 = vpop.f32.mrb[0].mxu0
      %v418 = vadd.f32 %v291, %v417
      %v419 = vpop.f32.mrb[0].mxu0
      %420 = vmatprep.mubr.f32.mxu0 0.0
      %421 = vmatmul.mubr.f32.gmra.mrb[0].mxu0 %v301
      %v422 = vpop.f32.mrb[0].mxu0
      %v423 = vadd.f32 %v291, %v422
      %v424 = vpop.f32.mrb[0].mxu0
      %425 = vmatprep.mubr.f32.mxu0 0.0
      %426 = vmatmul.mubr.f32.gmra.mrb[0].mxu0 %v304
      %v427 = vpop.f32.mrb[0].mxu0
      %v428 = vadd.f32 %v291, %v427
      %v429 = vpop.f32.mrb[0].mxu0
      %430 = vmatprep.mubr.f32.mxu0 0.0
      %431 = vmatmul.mubr.f32.gmra.mrb[0].mxu0 %v307
      %v432 = vpop.f32.mrb[0].mxu0
      %v433 = vadd.f32 %v291, %v432
      %v434 = vpop.f32.mrb[0].mxu0
      %435 = vmatprep.mubr.f32.mxu0 0.0
      %436 = vmatmul.mubr.f32.gmra.mrb[0].mxu0 %v310
      %v437 = vpop.f32.mrb[0].mxu0
      %v438 = vadd.f32 %v291, %v437
      %v439 = vpop.f32.mrb[0].mxu0
      %440 = vmatprep.mubr.f32.mxu0 0.0
      %441 = vmatmul.mubr.f32.gmra.mrb[0].mxu0 %v313
      %v442 = vpop.f32.mrb[0].mxu0
      %v443 = vadd.f32 %v291, %v442
      %v444 = vpop.f32.mrb[0].mxu0
      %445 = vmatprep.mubr.f32.mxu0 0.0
      %446 = vmatmul.mubr.f32.gmra.mrb[0].mxu0 %v316
      %v447 = vpop.f32.mrb[0].mxu0
      %v448 = vadd.f32 %v291, %v447
      %v449 = vpop.f32.mrb[0].mxu0
      %450 = vmatprep.mubr.f32.mxu0 0.0
      %451 = vmatmul.mubr.f32.gmra.mrb[0].mxu0 %v319
      %v452 = vpop.f32.mrb[0].mxu0
      %v453 = vadd.f32 %v291, %v452
      %v454 = vpop.f32.mrb[0].mxu0
      %455 = vmatprep.mubr.f32.mxu0 0.0
      %456 = vmatmul.mubr.f32.gmra.mrb[0].mxu0 %v322
      %v457 = vpop.f32.mrb[0].mxu0
      %v458 = vadd.f32 %v291, %v457
      %v459 = vpop.f32.mrb[0].mxu0
      %460 = vmatprep.mubr.f32.mxu0 0.0
      %461 = vmatmul.mubr.f32.gmra.mrb[0].mxu0 %v325
      %v462 = vpop.f32.mrb[0].mxu0
      %v463 = vadd.f32 %v291, %v462
      %v464 = vpop.f32.mrb[0].mxu0
      %465 = vmatprep.mubr.f32.mxu0 0.0
      %466 = vmatmul.mubr.f32.gmra.mrb[0].mxu0 %v328
      %v467 = vpop.f32.mrb[0].mxu0
      %v468 = vadd.f32 %v291, %v467
      %v469 = vpop.f32.mrb[0].mxu0
      %470 = vmatprep.mubr.f32.mxu0 0.0
      %471 = vmatmul.mubr.f32.gmra.mrb[0].mxu0 %v331
      %v472 = vpop.f32.mrb[0].mxu0
      %v473 = vadd.f32 %v291, %v472
      %v474 = vpop.f32.mrb[0].mxu0
      %475 = vmatprep.mubr.f32.mxu0 0.0
      %476 = vmatmul.mubr.f32.gmra.mrb[0].mxu0 %v334
      %v477 = vpop.f32.mrb[0].mxu0
      %v478 = vadd.f32 %v291, %v477
      %v479 = vpop.f32.mrb[0].mxu0
      %480 = vmatprep.mubr.f32.mxu0 0.0
      %481 = vmatmul.mubr.f32.gmra.mrb[0].mxu0 %v337
      %v482 = vpop.f32.mrb[0].mxu0
      %v483 = vadd.f32 %v291, %v482
      %v484 = vpop.f32.mrb[0].mxu0
      %485 = vmatprep.mubr.f32.mxu0 0.0
      %486 = vmatmul.mubr.f32.gmra.mrb[0].mxu0 %v340
      %v487 = vpop.f32.mrb[0].mxu0
      %v488 = vadd.f32 %v291, %v487
      %v489 = vpop.f32.mrb[0].mxu0
      %490 = vdwg.mxu0
      %v491 = vtanh.pop %v413
      %v492 = vtanh.pop %v418
      %v493 = vtanh.pop %v423
      %v494 = vtanh.pop %v428
      %v495 = vtanh.pop %v433
      %v496 = vtanh.pop %v438
      %v497 = vtanh.pop %v443
      %v498 = vtanh.pop %v448
      %v499 = vtanh.pop %v453
      %v500 = vtanh.pop %v458
      %v501 = vtanh.pop %v463
      %v502 = vtanh.pop %v468
      %v503 = vtanh.pop %v473
      %v504 = vtanh.pop %v478
      %v505 = vtanh.pop %v483
      %v506 = vtanh.pop %v488
      %v507 = vld [vmem:[%s3] sm:$0xff]
      %v508 = vld [vmem:[%s3 + $0x8] sm:$0xff]
      %v509 = vld [vmem:[%s3 + $0x10] sm:$0xff]
      %v510 = vld [vmem:[%s3 + $0x18] sm:$0xff]
      %v511 = vld [vmem:[%s3 + $0x20] sm:$0xff]
      %v512 = vld [vmem:[%s3 + $0x28] sm:$0xff]
      %v513 = vld [vmem:[%s3 + $0x30] sm:$0xff]
      %v514 = vld [vmem:[%s3 + $0x38] sm:$0xff]
      %v515 = vld [vmem:[%s4] sm:$0x1]
      %v517 = vlaneseq
      %v518 = vshrl.u32 %v517, 7
      %v519 = vsub.s32 0, %v518
      %v520 = vrot.slane %v515, %v519
      %vm522 = vcmask 523264
      %v524 = vsel %vm522, %v491, 0
      %v527 = vsel %vm522, %v492, 0
      %v530 = vsel %vm522, %v493, 0
      %v533 = vsel %vm522, %v494, 0
      %v536 = vsel %vm522, %v495, 0
      %v539 = vsel %vm522, %v496, 0
      %v542 = vsel %vm522, %v497, 0
      %v545 = vsel %vm522, %v498, 0
      %v548 = vsel %vm522, %v499, 0
      %v551 = vsel %vm522, %v500, 0
      %v554 = vsel %vm522, %v501, 0
      %v557 = vsel %vm522, %v502, 0
      %v560 = vsel %vm522, %v503, 0
      %v563 = vsel %vm522, %v504, 0
      %v566 = vsel %vm522, %v505, 0
      %v569 = vsel %vm522, %v506, 0
      %571 = vmatprep.subr.mxu0 0.0
      %572 = vmatpush1.msra.mxu0 %v507
      %573 = vmatprep.subr.mxu0 0.0
      %574 = vmatpush1.msra.mxu0 %v508
      %575 = vmatprep.subr.mxu0 0.0
      %576 = vmatpush1.msra.mxu0 %v509
      %577 = vmatprep.subr.mxu0 0.0
      %578 = vmatpush1.msra.mxu0 %v510
      %579 = vmatprep.subr.mxu0 0.0
      %580 = vmatpush1.msra.mxu0 %v511
      %581 = vmatprep.subr.mxu0 0.0
      %582 = vmatpush1.msra.mxu0 %v512
      %583 = vmatprep.subr.mxu0 0.0
      %584 = vmatpush1.msra.mxu0 %v513
      %585 = vmatprep.subr.mxu0 0.0
      %586 = vmatpush1.msra.mxu0 %v514
      %587 = vmatprep.subr.mxu0 0.0
      %588 = vmatpush1.msra.mxu0 0.0
      %589 = vmatprep.subr.mxu0 0.0
      %590 = vmatpush1.msra.mxu0 0.0
      %591 = vmatprep.subr.mxu0 0.0
      %592 = vmatpush1.msra.mxu0 0.0
      %593 = vmatprep.subr.mxu0 0.0
      %594 = vmatpush1.msra.mxu0 0.0
      %595 = vmatprep.subr.mxu0 0.0
      %596 = vmatpush1.msra.mxu0 0.0
      %597 = vmatprep.subr.mxu0 0.0
      %598 = vmatpush1.msra.mxu0 0.0
      %599 = vmatprep.subr.mxu0 0.0
      %600 = vmatpush1.msra.mxu0 0.0
      %601 = vmatprep.subr.mxu0 0.0
      %602 = vmatpush1.msra.mxu0 0.0
      %603 = vmatprep.subr.mxu0 0.0
      %604 = vmatpush1.msra.mxu0 0.0
      %605 = vmatprep.subr.mxu0 0.0
      %606 = vmatpush1.msra.mxu0 0.0
      %607 = vmatprep.subr.mxu0 0.0
      %608 = vmatpush1.msra.mxu0 0.0
      %609 = vmatprep.subr.mxu0 0.0
      %610 = vmatpush1.msra.mxu0 0.0
      %611 = vmatprep.subr.mxu0 0.0
      %612 = vmatpush1.msra.mxu0 0.0
      %613 = vmatprep.subr.mxu0 0.0
      %614 = vmatpush1.msra.mxu0 0.0
      %615 = vmatprep.subr.mxu0 0.0
      %616 = vmatpush1.msra.mxu0 0.0
      %617 = vmatprep.subr.mxu0 0.0
      %618 = vmatpush1.msra.mxu0 0.0
      %619 = vmatprep.subr.mxu0 0.0
      %620 = vmatpush1.msra.mxu0 0.0
      %621 = vmatprep.subr.mxu0 0.0
      %622 = vmatpush1.msra.mxu0 0.0
      %623 = vmatprep.subr.mxu0 0.0
      %624 = vmatpush1.msra.mxu0 0.0
      %625 = vmatprep.subr.mxu0 0.0
      %626 = vmatpush1.msra.mxu0 0.0
      %627 = vmatprep.subr.mxu0 0.0
      %628 = vmatpush1.msra.mxu0 0.0
      %629 = vmatprep.subr.mxu0 0.0
      %630 = vmatpush1.msra.mxu0 0.0
      %631 = vmatprep.subr.mxu0 0.0
      %632 = vmatpush1.msra.mxu0 0.0
      %633 = vmatprep.subr.mxu0 0.0
      %634 = vmatpush1.msra.mxu0 0.0
      %635 = vmatprep.mubr.f32.mxu0 0.0
      %636 = vmatmul.mubr.f32.gmra.mrb[0].mxu0 %v524
      %v637 = vpop.f32.mrb[0].mxu0
      %v638 = vadd.f32 %v520, %v637
      %v639 = vpop.f32.mrb[0].mxu0
      %640 = vmatprep.mubr.f32.mxu0 0.0
      %641 = vmatmul.mubr.f32.gmra.mrb[0].mxu0 %v527
      %v642 = vpop.f32.mrb[0].mxu0
      %v643 = vadd.f32 %v520, %v642
      %v644 = vpop.f32.mrb[0].mxu0
      %645 = vmatprep.mubr.f32.mxu0 0.0
      %646 = vmatmul.mubr.f32.gmra.mrb[0].mxu0 %v530
      %v647 = vpop.f32.mrb[0].mxu0
      %v648 = vadd.f32 %v520, %v647
      %v649 = vpop.f32.mrb[0].mxu0
      %650 = vmatprep.mubr.f32.mxu0 0.0
      %651 = vmatmul.mubr.f32.gmra.mrb[0].mxu0 %v533
      %v652 = vpop.f32.mrb[0].mxu0
      %v653 = vadd.f32 %v520, %v652
      %v654 = vpop.f32.mrb[0].mxu0
      %655 = vmatprep.mubr.f32.mxu0 0.0
      %656 = vmatmul.mubr.f32.gmra.mrb[0].mxu0 %v536
      %v657 = vpop.f32.mrb[0].mxu0
      %v658 = vadd.f32 %v520, %v657
      %v659 = vpop.f32.mrb[0].mxu0
      %660 = vmatprep.mubr.f32.mxu0 0.0
      %661 = vmatmul.mubr.f32.gmra.mrb[0].mxu0 %v539
      %v662 = vpop.f32.mrb[0].mxu0
      %v663 = vadd.f32 %v520, %v662
      %v664 = vpop.f32.mrb[0].mxu0
      %665 = vmatprep.mubr.f32.mxu0 0.0
      %666 = vmatmul.mubr.f32.gmra.mrb[0].mxu0 %v542
      %v667 = vpop.f32.mrb[0].mxu0
      %v668 = vadd.f32 %v520, %v667
      %v669 = vpop.f32.mrb[0].mxu0
      %670 = vmatprep.mubr.f32.mxu0 0.0
      %671 = vmatmul.mubr.f32.gmra.mrb[0].mxu0 %v545
      %v672 = vpop.f32.mrb[0].mxu0
      %v673 = vadd.f32 %v520, %v672
      %v674 = vpop.f32.mrb[0].mxu0
      %675 = vmatprep.mubr.f32.mxu0 0.0
      %676 = vmatmul.mubr.f32.gmra.mrb[0].mxu0 %v548
      %v677 = vpop.f32.mrb[0].mxu0
      %v678 = vadd.f32 %v520, %v677
      %v679 = vpop.f32.mrb[0].mxu0
      %680 = vmatprep.mubr.f32.mxu0 0.0
      %681 = vmatmul.mubr.f32.gmra.mrb[0].mxu0 %v551
      %v682 = vpop.f32.mrb[0].mxu0
      %v683 = vadd.f32 %v520, %v682
      %v684 = vpop.f32.mrb[0].mxu0
      %685 = vmatprep.mubr.f32.mxu0 0.0
      %686 = vmatmul.mubr.f32.gmra.mrb[0].mxu0 %v554
      %v687 = vpop.f32.mrb[0].mxu0
      %v688 = vadd.f32 %v520, %v687
      %v689 = vpop.f32.mrb[0].mxu0
      %690 = vmatprep.mubr.f32.mxu0 0.0
      %691 = vmatmul.mubr.f32.gmra.mrb[0].mxu0 %v557
      %v692 = vpop.f32.mrb[0].mxu0
      %v693 = vadd.f32 %v520, %v692
      %v694 = vpop.f32.mrb[0].mxu0
      %695 = vmatprep.mubr.f32.mxu0 0.0
      %696 = vmatmul.mubr.f32.gmra.mrb[0].mxu0 %v560
      %v697 = vpop.f32.mrb[0].mxu0
      %v698 = vadd.f32 %v520, %v697
      %v699 = vpop.f32.mrb[0].mxu0
      %700 = vmatprep.mubr.f32.mxu0 0.0
      %701 = vmatmul.mubr.f32.gmra.mrb[0].mxu0 %v563
      %v702 = vpop.f32.mrb[0].mxu0
      %v703 = vadd.f32 %v520, %v702
      %v704 = vpop.f32.mrb[0].mxu0
      %705 = vmatprep.mubr.f32.mxu0 0.0
      %706 = vmatmul.mubr.f32.gmra.mrb[0].mxu0 %v566
      %v707 = vpop.f32.mrb[0].mxu0
      %v708 = vadd.f32 %v520, %v707
      %v709 = vpop.f32.mrb[0].mxu0
      %710 = vmatprep.mubr.f32.mxu0 0.0
      %711 = vmatmul.mubr.f32.gmra.mrb[0].mxu0 %v569
      %v712 = vpop.f32.mrb[0].mxu0
      %v713 = vadd.f32 %v520, %v712
      %v714 = vpop.f32.mrb[0].mxu0
      %715 = vdwg.mxu0
      %716 = vst [vmem:[%s261] sm:$0xff] %v638
      %717 = vst [vmem:[%s261 + $0x8] sm:$0xff] %v643
      %718 = vst [vmem:[%s261 + $0x10] sm:$0xff] %v648
      %719 = vst [vmem:[%s261 + $0x18] sm:$0xff] %v653
      %720 = vst [vmem:[%s261 + $0x20] sm:$0xff] %v658
      %721 = vst [vmem:[%s261 + $0x28] sm:$0xff] %v663
      %722 = vst [vmem:[%s261 + $0x30] sm:$0xff] %v668
      %723 = vst [vmem:[%s261 + $0x38] sm:$0xff] %v673
      %724 = vst [vmem:[%s261 + $0x40] sm:$0xff] %v678
      %725 = vst [vmem:[%s261 + $0x48] sm:$0xff] %v683
      %726 = vst [vmem:[%s261 + $0x50] sm:$0xff] %v688
      %727 = vst [vmem:[%s261 + $0x58] sm:$0xff] %v693
      %728 = vst [vmem:[%s261 + $0x60] sm:$0xff] %v698
      %729 = vst [vmem:[%s261 + $0x68] sm:$0xff] %v703
      %730 = vst [vmem:[%s261 + $0x70] sm:$0xff] %v708
      %731 = vst [vmem:[%s261 + $0x78] sm:$0xff] %v713
      %v732 = vlaneseq
      %v733 = vand.u32 %v732, 127
      %vm734 = vcmp.lt.s32.totalorder %v733, 2
      %v735 = vsel %vm734, %v638, -inf
      %v736 = vsel %vm734, %v643, -inf
      %v737 = vsel %vm734, %v648, -inf
      %v738 = vsel %vm734, %v653, -inf
      %v739 = vsel %vm734, %v658, -inf
      %v740 = vsel %vm734, %v663, -inf
      %v741 = vsel %vm734, %v668, -inf
      %v742 = vsel %vm734, %v673, -inf
      %v743 = vsel %vm734, %v678, -inf
      %v744 = vsel %vm734, %v683, -inf
      %v745 = vsel %vm734, %v688, -inf
      %v746 = vsel %vm734, %v693, -inf
      %v747 = vsel %vm734, %v698, -inf
      %v748 = vsel %vm734, %v703, -inf
      %v749 = vsel %vm734, %v708, -inf
      %v750 = vsel %vm734, %v713, -inf
      %751 = vmax.xlane.f32.xlu0 %v735
      %v752 = vpop.xlane.xlu0 %751
      %753 = vmax.xlane.f32.xlu0 %v736
      %v754 = vpop.xlane.xlu0 %753
      %755 = vmax.xlane.f32.xlu0 %v737
      %v756 = vpop.xlane.xlu0 %755
      %757 = vmax.xlane.f32.xlu0 %v738
      %v758 = vpop.xlane.xlu0 %757
      %759 = vmax.xlane.f32.xlu0 %v739
      %v760 = vpop.xlane.xlu0 %759
      %761 = vmax.xlane.f32.xlu0 %v740
      %v762 = vpop.xlane.xlu0 %761
      %763 = vmax.xlane.f32.xlu0 %v741
      %v764 = vpop.xlane.xlu0 %763
      %765 = vmax.xlane.f32.xlu0 %v742
      %v766 = vpop.xlane.xlu0 %765
      %767 = vmax.xlane.f32.xlu0 %v743
      %v768 = vpop.xlane.xlu0 %767
      %769 = vmax.xlane.f32.xlu0 %v744
      %v770 = vpop.xlane.xlu0 %769
      %771 = vmax.xlane.f32.xlu0 %v745
      %v772 = vpop.xlane.xlu0 %771
      %773 = vmax.xlane.f32.xlu0 %v746
      %v774 = vpop.xlane.xlu0 %773
      %775 = vmax.xlane.f32.xlu0 %v747
      %v776 = vpop.xlane.xlu0 %775
      %777 = vmax.xlane.f32.xlu0 %v748
      %v778 = vpop.xlane.xlu0 %777
      %779 = vmax.xlane.f32.xlu0 %v749
      %v780 = vpop.xlane.xlu0 %779
      %781 = vmax.xlane.f32.xlu0 %v750
      %v782 = vpop.xlane.xlu0 %781
      %vm783 = vcmp.ge.f32.partialorder %v735, %v752
      %vm784 = vcmp.ge.f32.partialorder %v736, %v754
      %vm785 = vcmp.ge.f32.partialorder %v737, %v756
      %vm786 = vcmp.ge.f32.partialorder %v738, %v758
      %vm787 = vcmp.ge.f32.partialorder %v739, %v760
      %vm788 = vcmp.ge.f32.partialorder %v740, %v762
      %vm789 = vcmp.ge.f32.partialorder %v741, %v764
      %vm790 = vcmp.ge.f32.partialorder %v742, %v766
      %vm791 = vcmp.ge.f32.partialorder %v743, %v768
      %vm792 = vcmp.ge.f32.partialorder %v744, %v770
      %vm793 = vcmp.ge.f32.partialorder %v745, %v772
      %vm794 = vcmp.ge.f32.partialorder %v746, %v774
      %vm795 = vcmp.ge.f32.partialorder %v747, %v776
      %vm796 = vcmp.ge.f32.partialorder %v748, %v778
      %vm797 = vcmp.ge.f32.partialorder %v749, %v780
      %vm798 = vcmp.ge.f32.partialorder %v750, %v782
      %v799 = vsel %vm783, %v733, 128
      %v800 = vsel %vm784, %v733, 128
      %v801 = vsel %vm785, %v733, 128
      %v802 = vsel %vm786, %v733, 128
      %v803 = vsel %vm787, %v733, 128
      %v804 = vsel %vm788, %v733, 128
      %v805 = vsel %vm789, %v733, 128
      %v806 = vsel %vm790, %v733, 128
      %v807 = vsel %vm791, %v733, 128
      %v808 = vsel %vm792, %v733, 128
      %v809 = vsel %vm793, %v733, 128
      %v810 = vsel %vm794, %v733, 128
      %v811 = vsel %vm795, %v733, 128
      %v812 = vsel %vm796, %v733, 128
      %v813 = vsel %vm797, %v733, 128
      %v814 = vsel %vm798, %v733, 128
      %v815 = vand.u32 %v799, 65535
      %v816 = vshra.s32 %v799, 16
      %v817 = vcvt.s32.f32 %v815
      %v818 = vcvt.s32.f32 %v816
      %819 = vmin.xlane.f32.xlu0 %v818
      %v820 = vpop.xlane.xlu0 %819
      %vm821 = vcmp.eq.f32.partialorder %v818, %v820
      %v822 = vsel %vm821, %v817, inf
      %823 = vmin.xlane.f32.xlu0 %v822
      %v824 = vpop.xlane.xlu0 %823
      %v825 = vcvt.f32.s32 %v824
      %v826 = vcvt.f32.s32 %v820
      %v827 = vshll.u32 %v826, 16
      %v828 = vadd.s32 %v827, %v825
      %v829 = vand.u32 %v800, 65535
      %v830 = vshra.s32 %v800, 16
      %v831 = vcvt.s32.f32 %v829
      %v832 = vcvt.s32.f32 %v830
      %833 = vmin.xlane.f32.xlu0 %v832
      %v834 = vpop.xlane.xlu0 %833
      %vm835 = vcmp.eq.f32.partialorder %v832, %v834
      %v836 = vsel %vm835, %v831, inf
      %837 = vmin.xlane.f32.xlu0 %v836
      %v838 = vpop.xlane.xlu0 %837
      %v839 = vcvt.f32.s32 %v838
      %v840 = vcvt.f32.s32 %v834
      %v841 = vshll.u32 %v840, 16
      %v842 = vadd.s32 %v841, %v839
      %v843 = vand.u32 %v801, 65535
      %v844 = vshra.s32 %v801, 16
      %v845 = vcvt.s32.f32 %v843
      %v846 = vcvt.s32.f32 %v844
      %847 = vmin.xlane.f32.xlu0 %v846
      %v848 = vpop.xlane.xlu0 %847
      %vm849 = vcmp.eq.f32.partialorder %v846, %v848
      %v850 = vsel %vm849, %v845, inf
      %851 = vmin.xlane.f32.xlu0 %v850
      %v852 = vpop.xlane.xlu0 %851
      %v853 = vcvt.f32.s32 %v852
      %v854 = vcvt.f32.s32 %v848
      %v855 = vshll.u32 %v854, 16
      %v856 = vadd.s32 %v855, %v853
      %v857 = vand.u32 %v802, 65535
      %v858 = vshra.s32 %v802, 16
      %v859 = vcvt.s32.f32 %v857
      %v860 = vcvt.s32.f32 %v858
      %861 = vmin.xlane.f32.xlu0 %v860
      %v862 = vpop.xlane.xlu0 %861
      %vm863 = vcmp.eq.f32.partialorder %v860, %v862
      %v864 = vsel %vm863, %v859, inf
      %865 = vmin.xlane.f32.xlu0 %v864
      %v866 = vpop.xlane.xlu0 %865
      %v867 = vcvt.f32.s32 %v866
      %v868 = vcvt.f32.s32 %v862
      %v869 = vshll.u32 %v868, 16
      %v870 = vadd.s32 %v869, %v867
      %v871 = vand.u32 %v803, 65535
      %v872 = vshra.s32 %v803, 16
      %v873 = vcvt.s32.f32 %v871
      %v874 = vcvt.s32.f32 %v872
      %875 = vmin.xlane.f32.xlu0 %v874
      %v876 = vpop.xlane.xlu0 %875
      %vm877 = vcmp.eq.f32.partialorder %v874, %v876
      %v878 = vsel %vm877, %v873, inf
      %879 = vmin.xlane.f32.xlu0 %v878
      %v880 = vpop.xlane.xlu0 %879
      %v881 = vcvt.f32.s32 %v880
      %v882 = vcvt.f32.s32 %v876
      %v883 = vshll.u32 %v882, 16
      %v884 = vadd.s32 %v883, %v881
      %v885 = vand.u32 %v804, 65535
      %v886 = vshra.s32 %v804, 16
      %v887 = vcvt.s32.f32 %v885
      %v888 = vcvt.s32.f32 %v886
      %889 = vmin.xlane.f32.xlu0 %v888
      %v890 = vpop.xlane.xlu0 %889
      %vm891 = vcmp.eq.f32.partialorder %v888, %v890
      %v892 = vsel %vm891, %v887, inf
      %893 = vmin.xlane.f32.xlu0 %v892
      %v894 = vpop.xlane.xlu0 %893
      %v895 = vcvt.f32.s32 %v894
      %v896 = vcvt.f32.s32 %v890
      %v897 = vshll.u32 %v896, 16
      %v898 = vadd.s32 %v897, %v895
      %v899 = vand.u32 %v805, 65535
      %v900 = vshra.s32 %v805, 16
      %v901 = vcvt.s32.f32 %v899
      %v902 = vcvt.s32.f32 %v900
      %903 = vmin.xlane.f32.xlu0 %v902
      %v904 = vpop.xlane.xlu0 %903
      %vm905 = vcmp.eq.f32.partialorder %v902, %v904
      %v906 = vsel %vm905, %v901, inf
      %907 = vmin.xlane.f32.xlu0 %v906
      %v908 = vpop.xlane.xlu0 %907
      %v909 = vcvt.f32.s32 %v908
      %v910 = vcvt.f32.s32 %v904
      %v911 = vshll.u32 %v910, 16
      %v912 = vadd.s32 %v911, %v909
      %v913 = vand.u32 %v806, 65535
      %v914 = vshra.s32 %v806, 16
      %v915 = vcvt.s32.f32 %v913
      %v916 = vcvt.s32.f32 %v914
      %917 = vmin.xlane.f32.xlu0 %v916
      %v918 = vpop.xlane.xlu0 %917
      %vm919 = vcmp.eq.f32.partialorder %v916, %v918
      %v920 = vsel %vm919, %v915, inf
      %921 = vmin.xlane.f32.xlu0 %v920
      %v922 = vpop.xlane.xlu0 %921
      %v923 = vcvt.f32.s32 %v922
      %v924 = vcvt.f32.s32 %v918
      %v925 = vshll.u32 %v924, 16
      %v926 = vadd.s32 %v925, %v923
      %v927 = vand.u32 %v807, 65535
      %v928 = vshra.s32 %v807, 16
      %v929 = vcvt.s32.f32 %v927
      %v930 = vcvt.s32.f32 %v928
      %931 = vmin.xlane.f32.xlu0 %v930
      %v932 = vpop.xlane.xlu0 %931
      %vm933 = vcmp.eq.f32.partialorder %v930, %v932
      %v934 = vsel %vm933, %v929, inf
      %935 = vmin.xlane.f32.xlu0 %v934
      %v936 = vpop.xlane.xlu0 %935
      %v937 = vcvt.f32.s32 %v936
      %v938 = vcvt.f32.s32 %v932
      %v939 = vshll.u32 %v938, 16
      %v940 = vadd.s32 %v939, %v937
      %v941 = vand.u32 %v808, 65535
      %v942 = vshra.s32 %v808, 16
      %v943 = vcvt.s32.f32 %v941
      %v944 = vcvt.s32.f32 %v942
      %945 = vmin.xlane.f32.xlu0 %v944
      %v946 = vpop.xlane.xlu0 %945
      %vm947 = vcmp.eq.f32.partialorder %v944, %v946
      %v948 = vsel %vm947, %v943, inf
      %949 = vmin.xlane.f32.xlu0 %v948
      %v950 = vpop.xlane.xlu0 %949
      %v951 = vcvt.f32.s32 %v950
      %v952 = vcvt.f32.s32 %v946
      %v953 = vshll.u32 %v952, 16
      %v954 = vadd.s32 %v953, %v951
      %v955 = vand.u32 %v809, 65535
      %v956 = vshra.s32 %v809, 16
      %v957 = vcvt.s32.f32 %v955
      %v958 = vcvt.s32.f32 %v956
      %959 = vmin.xlane.f32.xlu0 %v958
      %v960 = vpop.xlane.xlu0 %959
      %vm961 = vcmp.eq.f32.partialorder %v958, %v960
      %v962 = vsel %vm961, %v957, inf
      %963 = vmin.xlane.f32.xlu0 %v962
      %v964 = vpop.xlane.xlu0 %963
      %v965 = vcvt.f32.s32 %v964
      %v966 = vcvt.f32.s32 %v960
      %v967 = vshll.u32 %v966, 16
      %v968 = vadd.s32 %v967, %v965
      %v969 = vand.u32 %v810, 65535
      %v970 = vshra.s32 %v810, 16
      %v971 = vcvt.s32.f32 %v969
      %v972 = vcvt.s32.f32 %v970
      %973 = vmin.xlane.f32.xlu0 %v972
      %v974 = vpop.xlane.xlu0 %973
      %vm975 = vcmp.eq.f32.partialorder %v972, %v974
      %v976 = vsel %vm975, %v971, inf
      %977 = vmin.xlane.f32.xlu0 %v976
      %v978 = vpop.xlane.xlu0 %977
      %v979 = vcvt.f32.s32 %v978
      %v980 = vcvt.f32.s32 %v974
      %v981 = vshll.u32 %v980, 16
      %v982 = vadd.s32 %v981, %v979
      %v983 = vand.u32 %v811, 65535
      %v984 = vshra.s32 %v811, 16
      %v985 = vcvt.s32.f32 %v983
      %v986 = vcvt.s32.f32 %v984
      %987 = vmin.xlane.f32.xlu0 %v986
      %v988 = vpop.xlane.xlu0 %987
      %vm989 = vcmp.eq.f32.partialorder %v986, %v988
      %v990 = vsel %vm989, %v985, inf
      %991 = vmin.xlane.f32.xlu0 %v990
      %v992 = vpop.xlane.xlu0 %991
      %v993 = vcvt.f32.s32 %v992
      %v994 = vcvt.f32.s32 %v988
      %v995 = vshll.u32 %v994, 16
      %v996 = vadd.s32 %v995, %v993
      %v997 = vand.u32 %v812, 65535
      %v998 = vshra.s32 %v812, 16
      %v999 = vcvt.s32.f32 %v997
      %v1000 = vcvt.s32.f32 %v998
      %1001 = vmin.xlane.f32.xlu0 %v1000
      %v1002 = vpop.xlane.xlu0 %1001
      %vm1003 = vcmp.eq.f32.partialorder %v1000, %v1002
      %v1004 = vsel %vm1003, %v999, inf
      %1005 = vmin.xlane.f32.xlu0 %v1004
      %v1006 = vpop.xlane.xlu0 %1005
      %v1007 = vcvt.f32.s32 %v1006
      %v1008 = vcvt.f32.s32 %v1002
      %v1009 = vshll.u32 %v1008, 16
      %v1010 = vadd.s32 %v1009, %v1007
      %v1011 = vand.u32 %v813, 65535
      %v1012 = vshra.s32 %v813, 16
      %v1013 = vcvt.s32.f32 %v1011
      %v1014 = vcvt.s32.f32 %v1012
      %1015 = vmin.xlane.f32.xlu0 %v1014
      %v1016 = vpop.xlane.xlu0 %1015
      %vm1017 = vcmp.eq.f32.partialorder %v1014, %v1016
      %v1018 = vsel %vm1017, %v1013, inf
      %1019 = vmin.xlane.f32.xlu0 %v1018
      %v1020 = vpop.xlane.xlu0 %1019
      %v1021 = vcvt.f32.s32 %v1020
      %v1022 = vcvt.f32.s32 %v1016
      %v1023 = vshll.u32 %v1022, 16
      %v1024 = vadd.s32 %v1023, %v1021
      %v1025 = vand.u32 %v814, 65535
      %v1026 = vshra.s32 %v814, 16
      %v1027 = vcvt.s32.f32 %v1025
      %v1028 = vcvt.s32.f32 %v1026
      %1029 = vmin.xlane.f32.xlu0 %v1028
      %v1030 = vpop.xlane.xlu0 %1029
      %vm1031 = vcmp.eq.f32.partialorder %v1028, %v1030
      %v1032 = vsel %vm1031, %v1027, inf
      %1033 = vmin.xlane.f32.xlu0 %v1032
      %v1034 = vpop.xlane.xlu0 %1033
      %v1035 = vcvt.f32.s32 %v1034
      %v1036 = vcvt.f32.s32 %v1030
      %v1037 = vshll.u32 %v1036, 16
      %v1038 = vadd.s32 %v1037, %v1035
      %vm1039 = vcmask 7168
      %1040 = vst.msk [vmem:[%s267] sm:$0xff] %vm1039, %v828
      %1041 = vst.msk [vmem:[%s267 + $0x8] sm:$0xff] %vm1039, %v842
      %1042 = vst.msk [vmem:[%s267 + $0x10] sm:$0xff] %vm1039, %v856
      %1043 = vst.msk [vmem:[%s267 + $0x18] sm:$0xff] %vm1039, %v870
      %1044 = vst.msk [vmem:[%s267 + $0x20] sm:$0xff] %vm1039, %v884
      %1045 = vst.msk [vmem:[%s267 + $0x28] sm:$0xff] %vm1039, %v898
      %1046 = vst.msk [vmem:[%s267 + $0x30] sm:$0xff] %vm1039, %v912
      %1047 = vst.msk [vmem:[%s267 + $0x38] sm:$0xff] %vm1039, %v926
      %1048 = vst.msk [vmem:[%s267 + $0x40] sm:$0xff] %vm1039, %v940
      %1049 = vst.msk [vmem:[%s267 + $0x48] sm:$0xff] %vm1039, %v954
      %1050 = vst.msk [vmem:[%s267 + $0x50] sm:$0xff] %vm1039, %v968
      %1051 = vst.msk [vmem:[%s267 + $0x58] sm:$0xff] %vm1039, %v982
      %1052 = vst.msk [vmem:[%s267 + $0x60] sm:$0xff] %vm1039, %v996
      %1053 = vst.msk [vmem:[%s267 + $0x68] sm:$0xff] %vm1039, %v1010
      %1054 = vst.msk [vmem:[%s267 + $0x70] sm:$0xff] %vm1039, %v1024
      %1055 = vst.msk [vmem:[%s267 + $0x78] sm:$0xff] %vm1039, %v1038
      %s1056 = smul.u32 16, %s18
      %p1057 = scmp.lt.s32.totalorder %s1056, 31
      %s1058 = scalar_select %p1057, %s1056, 31
      %s1059 = smul.addr %s1058, 8
      %s1060 = scalar_lea.vmem %s5, %s1059
      %s1061 = smul.u32 16, %s18
      %p1062 = scmp.lt.s32.totalorder %s1061, 31
      %s1063 = scalar_select %p1062, %s1061, 31
      %s1064 = smul.addr %s1063, 8
      %s1065 = scalar_lea.vmem %s6, %s1064
      // Predicated region
      $region41: #{network_forward_and_act.1} parent=39 // pred_check
        %p1066 = pneg %p146
      $region42: #{network_forward_and_act.1} parent=39 // pred_check_branch
        %1068 = sbr.rel (%p1066) target = $region44
      $region43: #{network_forward_and_act.1} parent=39 // pred_region
        %s1069 = smul.u32 16, %s18
      $region44: #{network_forward_and_act.1} parent=39 // pred_fallthru
        _
      // Predicated region
      $region45: #{network_forward_and_act.1} parent=39 // pred_check
        %p1070 = pneg %p172
      $region46: #{network_forward_and_act.1} parent=39 // pred_check_branch
        %1072 = sbr.rel (%p1070) target = $region48
      $region47: #{network_forward_and_act.1} parent=39 // pred_region
        %s1073 = smul.u32 16, %s18
      $region48: #{network_forward_and_act.1} parent=39 // pred_fallthru
        _
    $region40: #{network_forward_and_act.1} parent=5 // pred_fallthru
      _
    %p1074 = scmp.le.s32.totalorder 2, %s13
    // Predicated region
    $region49: #{network_forward_and_act.1} parent=5 // pred_check
      %p1075 = pneg %p1074
    $region50: #{network_forward_and_act.1} parent=5 // pred_check_branch
      %1077 = sbr.rel (%p1075) target = $region52
    $region51: #{network_forward_and_act.1} parent=5 // pred_region
      %s1078 = ssub.s32 %s13, 2
      // Predicated region
      $region53: #{network_forward_and_act.1} parent=51 // pred_check
        %p1079 = pneg %p152
      $region54: #{network_forward_and_act.1} parent=51 // pred_check_branch
        %1081 = sbr.rel (%p1079) target = $region56
      $region55: #{network_forward_and_act.1} parent=51 // pred_region
        %s1082 = smul.u32 16, %s19
        %p1083 = scmp.lt.s32.totalorder %s1082, 31
        %s1084 = scalar_select %p1083, %s1082, 31
        %s1085 = smul.addr %s1084, 8
        %s1086 = scalar_lea.vmem %s5, %s1085
      $region56: #{network_forward_and_act.1} parent=51 // pred_fallthru
        _
      // Predicated region
      $region57: #{network_forward_and_act.1} parent=51 // pred_check
        %p1087 = pneg %p178
      $region58: #{network_forward_and_act.1} parent=51 // pred_check_branch
        %1089 = sbr.rel (%p1087) target = $region60
      $region59: #{network_forward_and_act.1} parent=51 // pred_region
        %s1090 = smul.u32 16, %s19
        %p1091 = scmp.lt.s32.totalorder %s1090, 31
        %s1092 = scalar_select %p1091, %s1090, 31
        %s1093 = smul.addr %s1092, 8
        %s1094 = scalar_lea.vmem %s6, %s1093
      $region60: #{network_forward_and_act.1} parent=51 // pred_fallthru
        _
    $region52: #{network_forward_and_act.1} parent=5 // pred_fallthru
      _
  $region6: #{network_forward_and_act.1} parent=0 // loop_footer
    %s17 = sadd.s32 1, %s13
  $region7: #{network_forward_and_act.1} parent=0 // loop_footer_branch
    %12 = sbr.rel target = $region3
  $region8: #{network_forward_and_act.1} parent=0 // loop_exit
    _

</llo_original>
